<compile_context>
chip_gen: v7x
topology: tpu7x:2x2x1
jax: 0.10.0
libtpu: 0.0.40
codegen_flags: <defaults>
</compile_context>

<pallas_src>
import math

import jax
import jax.numpy as jnp
from jax.experimental import pallas as pl
from jax.experimental.pallas import tpu as pltpu


def _drop_path_kernel(scale_ref, x_ref, o_ref):
    # scale_ref: (row_block, 1)          per-row scale = binary_mask / keep_prob
    # x_ref    : (row_block, lane_block) tile of the reshaped input slab
    # o_ref    : (row_block, lane_block)
    # HBM-bound: 1 vld + 1 VPU mul + 1 vst per vreg; nothing to micro-optimize.
    o_ref[...] = x_ref[...] * scale_ref[...]


# (target x-tile bytes, cap on vmem_limit_bytes) per TPU generation.
_GEN_CFG = {
    "v7x":   (6 << 20, 48 << 20),   # 64 MiB physical VMEM -> keep footprint ~26 MiB
    "v6e":   (8 << 20, 64 << 20),   # 128 MiB physical, ~1.35 TB/s HBM
    "v5e":   (3 << 20, 64 << 20),   # ~0.82 TB/s HBM: 3 MiB tiles already ~94% roofline
    "other": (4 << 20, 48 << 20),
}


def _tpu_generation():
    try:
        kind = jax.devices()[0].device_kind.lower()
    except Exception:
        return "other"
    if "v5e" in kind or "v5 lite" in kind or "v5lite" in kind:
        return "v5e"
    if "v6" in kind:
        return "v6e"
    if "v7" in kind or "7x" in kind:
        return "v7x"
    return "other"


def _largest_divisor(n, *, multiple_of=1, cap=None):
    """Largest d with d | n, d % multiple_of == 0 and d <= cap (None if none)."""
    if cap is None:
        cap = n
    best = None
    d = 1
    while d * d <= n:
        if n % d == 0:
            for c in (d, n // d):
                if c <= cap and c % multiple_of == 0 and (best is None or c > best):
                    best = c
        d += 1
    return best


def _pick_row_block(rows, cap, sublane_mult):
    """Largest divisor of rows <= cap that is a multiple of sublane_mult, else 8."""
    for m in sorted({sublane_mult, 8}, reverse=True):
        rb = _largest_divisor(rows, multiple_of=m, cap=cap)
        if rb is not None:
            return rb
    return None


def _choose_row_split(batch, n, sublane_mult):
    """Smallest R with R | n and (n // R) % 128 == 0, preferring
    (batch*R) % sublane_mult == 0, then (batch*R) % 8 == 0, then lane-only."""
    req_full = sublane_mult // math.gcd(batch, sublane_mult)
    req_8 = 8 // math.gcd(batch, 8)
    best_full = best_8 = best_lane = None
    d = 1
    while d * d <= n:
        if n % d == 0:
            for r in (d, n // d):
                if (n // r) % 128 != 0:
                    continue
                if best_lane is None or r < best_lane:
                    best_lane = r
                if r % req_8 == 0 and (best_8 is None or r < best_8):
                    best_8 = r
                if r % req_full == 0 and (best_full is None or r < best_full):
                    best_full = r
        d += 1
    for best in (best_full, best_8, best_lane):
        if best is not None:
            return best
    return 1


def _select_blocks(rows, lanes, itemsize, sublane_mult, block_bytes, min_row_blocks):
    """Pick (row_block, lane_block) divisor blocks.

    Preferred: lane_block == lanes (each tile is one contiguous HBM DMA, the
    grid collapses to 1-D over rows).  Fall back to 2-D tiling only when a
    single full-lane row block cannot fit the byte budget.
    """
    # 1) Full-lane blocks, tile along rows only.
    row_budget = block_bytes // max(1, lanes * itemsize)
    base_cap = min(rows, max(1, row_budget))
    caps = []
    if min_row_blocks > 1 and rows // min_row_blocks >= 8:
        caps.append(min(base_cap, rows // min_row_blocks))   # keep >=2 blocks (megacore)
    caps.append(base_cap)
    for cap in caps:
        rb = _pick_row_block(rows, cap, sublane_mult)
        if rb is not None:
            return rb, lanes
    # 2) 2-D divisor tiling (lanes too wide for the budget, or rows unaligned).
    rb = _pick_row_block(rows, min(rows, 1024), sublane_mult)
    if rb is None:
        rb = rows  # full-extent rows (rows not 8-aligned); rare
    lane_cap = max(128, block_bytes // max(1, rb * itemsize))
    lb = _largest_divisor(lanes, multiple_of=128, cap=min(lanes, lane_cap))
    if lb is None:
        lb = lanes  # lanes not 128-divisible; vmem_limit is sized to the real tile
    return rb, lb


def drop_path(x, drop_prob: float = 0.0, training: bool = False, *, key=None,
              target_block_bytes: int | None = None, donate_x: bool = False):
    """Pallas implementation of timm's drop_path (forward).

    x: (B, ...) float array, e.g. NCHW.
    """
    if drop_prob == 0.0 or not training:
        return x
    if key is None:
        raise ValueError(
            "drop_path: a PRNG key is required when training with drop_prob > 0.")

    gen = _tpu_generation()
    gen_block_bytes, vmem_cap = _GEN_CFG[gen]
    if target_block_bytes is None:
        target_block_bytes = gen_block_bytes

    keep_prob = 1.0 - float(drop_prob)
    B = x.shape[0]
    N = int(math.prod(x.shape[1:]))
    itemsize = jnp.dtype(x.dtype).itemsize
    sublane_mult = max(8, 32 // itemsize)   # 8 f32, 16 bf16, 32 int8/fp8

    # Per-sample Bernoulli mask, matching the PyTorch reference:
    #   random_tensor = floor(keep_prob + U[0,1))  -> 0/1 mask
    # Computed in f32 to avoid biasing the drop rate for low-precision inputs;
    # the 1/keep_prob division is folded into the per-sample scale.
    # TODO(synk): mask generation could move in-kernel via pltpu.prng_seed /
    # prng_random_bits, but that changes the RNG stream vs jax.random, so it
    # is intentionally left host-side.
    u = jax.random.uniform(key, (B, 1), dtype=jnp.float32)
    random_tensor = jnp.floor(keep_prob + u)
    scale = (random_tensor / keep_prob).astype(x.dtype)             # (B, 1)

    # Reshape to a (rows, lanes) slab: rows sublane-aligned, lanes 128-aligned
    # whenever N's factorization allows it (C*H*W is usually highly composite).
    R = _choose_row_split(B, N, sublane_mult)
    rows, lanes = B * R, N // R
    x2d = x.reshape(rows, lanes)
    scale_rows = jnp.repeat(scale, R, axis=0)                        # (rows, 1)

    min_row_blocks = 2 if gen == "v7x" else 1   # keep both v7x TensorCores busy
    row_block, lane_block = _select_blocks(
        rows, lanes, itemsize, sublane_mult, target_block_bytes, min_row_blocks)

    # VMEM limit sized to the actual double-buffered footprint:
    #   2 x (x tile + out tile + scale column) + slack, clamped per generation.
    tile_bytes = row_block * lane_block * itemsize
    footprint = 4 * tile_bytes + 2 * row_block * itemsize + (2 << 20)
    vmem_limit = int(min(max(footprint, 32 << 20), vmem_cap))

    grid_rows = rows // row_block
    grid_lanes = lanes // lane_block

    if grid_lanes == 1:
        # Full-lane blocks: 1-D grid, one contiguous DMA per step.
        grid = (grid_rows,)
        scale_spec = pl.BlockSpec((row_block, 1), lambda i: (i, 0))
        x_spec = pl.BlockSpec((row_block, lane_block), lambda i: (i, 0))
        out_spec = pl.BlockSpec((row_block, lane_block), lambda i: (i, 0))
        dims = ("parallel",)
    else:
        grid = (grid_rows, grid_lanes)
        scale_spec = pl.BlockSpec((row_block, 1), lambda i, j: (i, 0))
        x_spec = pl.BlockSpec((row_block, lane_block), lambda i, j: (i, j))
        out_spec = pl.BlockSpec((row_block, lane_block), lambda i, j: (i, j))
        dims = ("parallel", "parallel")

    out2d = pl.pallas_call(
        _drop_path_kernel,
        out_shape=jax.ShapeDtypeStruct((rows, lanes), x.dtype),
        grid_spec=pltpu.PrefetchScalarGridSpec(
            num_scalar_prefetch=0,
            grid=grid,
            in_specs=[scale_spec, x_spec],
            out_specs=out_spec,
        ),
        compiler_params=pltpu.CompilerParams(
            dimension_semantics=dims,
            vmem_limit_bytes=vmem_limit),
        cost_estimate=pl.CostEstimate(
            flops=rows * lanes,
            transcendentals=0,
            bytes_accessed=2 * rows * lanes * itemsize + rows * itemsize),
        input_output_aliases=({1: 0} if donate_x else {}),
    )(scale_rows, x2d)

    return out2d.reshape(x.shape)


class DropPath:
    """Mirror of the PyTorch DropPath module (no parameters)."""

    def __init__(self, drop_prob=None):
        self.drop_prob = drop_prob
        self.training = True

    def __call__(self, x, key=None):
        return drop_path(x, self.drop_prob or 0.0, self.training, key=key)


if __name__ == "__main__":
    key = jax.random.PRNGKey(0)
    kx, kmask = jax.random.split(key)

    # Small NCHW input consistent with the module's usage.
    x = jax.random.normal(kx, (2, 4, 16, 16), dtype=jnp.float32)

    mod = DropPath(drop_prob=0.3)
    mod.training = True
    y = jax.block_until_ready(mod(x, key=kmask))

    # Pure-JAX reference of identical semantics (same PRNG draw).
    keep_prob = 1.0 - 0.3
    u = jax.random.uniform(kmask, (2, 1), dtype=jnp.float32)
    mask = jnp.floor(keep_prob + u).reshape(2, 1, 1, 1)
    ref = x / keep_prob * mask
    assert jnp.allclose(y, ref, atol=1e-6, rtol=1e-5), float(jnp.max(jnp.abs(y - ref)))

    # bf16 path exercises the dtype-aware (16, 128) packed-sublane tiling.
    xb = jax.random.normal(kx, (2, 8, 16, 16), dtype=jnp.bfloat16)
    yb = jax.block_until_ready(drop_path(xb, 0.3, True, key=kmask))
    refb = xb * (mask / keep_prob).astype(jnp.bfloat16)
    assert jnp.allclose(yb.astype(jnp.float32), refb.astype(jnp.float32),
                        atol=1e-2, rtol=1e-2)

    # Eval-mode / drop_prob=0 path is identity.
    mod.training = False
    y_eval = jax.block_until_ready(mod(x, key=kmask))
    assert jnp.array_equal(y_eval, x)

    print("KERNEL_OK")
</pallas_src>

<mosaic_0001>
module attributes {stable_mosaic.version = 11 : i64} {
  func.func @_drop_path_kernel(%arg0: i32, %arg1: memref<8x1xf32, #tpu.memory_space<vmem>>, %arg2: memref<8x256xf32, #tpu.memory_space<vmem>>, %arg3: memref<8x256xf32, #tpu.memory_space<vmem>>) attributes {dimension_semantics = [#tpu.dimension_semantics<parallel>], iteration_bounds = array<i64: 1>, scalar_prefetch = 0 : i64, scratch_operands = 0 : i64, tpu.core_type = #tpu.core_type<tc>, window_params = [{transform_indices = @transform_0, window_bounds = array<i64: 8, 1>}, {transform_indices = @transform_1, window_bounds = array<i64: 8, 256>}, {transform_indices = @transform_2, window_bounds = array<i64: 8, 256>}]} {
    %c0 = arith.constant 0 : index
    %c0_0 = arith.constant 0 : index
    %0 = vector.load %arg2[%c0, %c0_0] : memref<8x256xf32, #tpu.memory_space<vmem>>, vector<8x256xf32>
    %c0_1 = arith.constant 0 : index
    %c0_2 = arith.constant 0 : index
    %1 = vector.load %arg1[%c0_1, %c0_2] : memref<8x1xf32, #tpu.memory_space<vmem>>, vector<8x1xf32>
    %2 = vector.broadcast %1 : vector<8x1xf32> to vector<8x256xf32>
    %3 = arith.mulf %0, %2 : vector<8x256xf32>
    %c0_3 = arith.constant 0 : index
    %c0_4 = arith.constant 0 : index
    %4 = vector.load %arg3[%c0_3, %c0_4] : memref<8x256xf32, #tpu.memory_space<vmem>>, vector<8x256xf32>
    tpu.vector_store %arg3[%c0_3, %c0_4], %3 {strides = array<i32>} : memref<8x256xf32, #tpu.memory_space<vmem>>, vector<8x256xf32>,
    return
  }
  func.func @transform_0(%arg0: i32) -> (i32, i32) {
    %c0_i32 = arith.constant 0 : i32
    %c0_i32_0 = arith.constant 0 : i32
    return %arg0, %c0_i32 : i32, i32
  }
  func.func @transform_1(%arg0: i32) -> (i32, i32) {
    %c0_i32 = arith.constant 0 : i32
    %c0_i32_0 = arith.constant 0 : i32
    return %arg0, %c0_i32 : i32, i32
  }
  func.func @transform_2(%arg0: i32) -> (i32, i32) {
    %c0_i32 = arith.constant 0 : i32
    %c0_i32_0 = arith.constant 0 : i32
    return %arg0, %c0_i32 : i32, i32
  }
}

</mosaic_0001>

<llo_original>
// kernel: tpu_custom_call.1
$region0: #{tpu_custom_call.1}
  #allocation0 [shape = 'u32[]', space=smem, size = 0x4, offset = 0x4, fixed_abs, tag = 'smem constant byte address 0x4 - core index']
  #allocation1 [shape = 'u32[144,128]{1,0:T(1,128)}', space=vmem, size = 0x12000, scoped, tag = 'internal scratch']
  %s0 = inlined_call_operand.vmem [shape: f32[8,1], index: 0, kind: input, shape index: {}]
  %s1 = inlined_call_operand.hbm [shape: f32[8,256], index: 1, kind: input, shape index: {}]
  %s2 = inlined_call_operand.hbm [shape: f32[8,256], index: 2, kind: output, shape index: {}]
  %s3 = sld [smem:[#allocation0]]
  $region22: #{tpu_custom_call.1} parent=0
    _
  %s5 = ssub.s32 1, %s3
  %s6 = scalar_select 0, %s5, %s3
  $region1: #{tpu_custom_call.1} parent=0
    #allocation2 [shape = 'u8[8192]{0}', space=vmem, size = 0x2000, scoped, tag = 'input window, operand 1, single buffered']
    #allocation3 [shape = 's32[1]{0}', space=sflag, size = 0x4, scoped, tag = 'scoped memory for tpu_custom_call.1']
    #allocation4 [shape = 's32[1]{0}', space=sflag, size = 0x4, scoped, tag = 'scoped memory for tpu_custom_call.1']
    #allocation5 [shape = 'u8[8192]{0}', space=vmem, size = 0x2000, scoped, tag = 'output window, operand 0, single buffered']
    %7 = vsyncpa [#allocation3], 0
    %8 = vsyncpa [#allocation4], 0
    // Predicated region
    $region2: #{tpu_custom_call.1} parent=1 // pred_check
      _
    $region3: #{tpu_custom_call.1} parent=1 // pred_check_branch
      %10 = sbr.rel (0) target = $region5
    $region4: #{tpu_custom_call.1} parent=1 // pred_region
      _
    $region5: #{tpu_custom_call.1} parent=1 // pred_fallthru
      _
    // Predicated region
    $region6: #{tpu_custom_call.1} parent=1 // pred_check
      _
    $region7: #{tpu_custom_call.1} parent=1 // pred_check_branch
      %12 = sbr.rel (0) target = $region9
    $region8: #{tpu_custom_call.1} parent=1 // pred_region
      %s14 = ssub.s32 256, 256
      %15 = vsyncadd [#allocation3], %s14
      %s17 = sshll.u32 [#allocation2], 4
      %s18 = int_to_ptr.vmem [resolvable:$true] %s17
      %20 = dma.hbm_to_vmem [thread:$0]  %s1, 256, %s18, [#allocation3]
    $region9: #{tpu_custom_call.1} parent=1 // pred_fallthru
      _
    // Predicated region
    $region10: #{tpu_custom_call.1} parent=1 // pred_check
      _
    $region11: #{tpu_custom_call.1} parent=1 // pred_check_branch
      %22 = sbr.rel (0) target = $region13
    $region12: #{tpu_custom_call.1} parent=1 // pred_region
      %23 = dma.done [#allocation3], 256
    $region13: #{tpu_custom_call.1} parent=1 // pred_fallthru
      _
    %v24 = vld [vmem:[#allocation2] sm:$0xff]
    %v25 = vld [vmem:[#allocation2 + $0x8] sm:$0xff]
    %v26 = vld [vmem:[%s0] sm:$0xff]
    %28 = vset.pattern.permute.xlu0 0
    %29 = vperm.xlu0 %28, %v26
    %v30 = vpop.permute.xlu0 %29
    %v32 = vmul.f32 %v24, %v30
    %v33 = vmul.f32 %v25, %v30
    %34 = vst [vmem:[#allocation5] sm:$0xff] %v32
    %35 = vst [vmem:[#allocation5 + $0x8] sm:$0xff] %v33
    // Predicated region
    $region14: #{tpu_custom_call.1} parent=1 // pred_check
      _
    $region15: #{tpu_custom_call.1} parent=1 // pred_check_branch
      %37 = sbr.rel (0) target = $region17
    $region16: #{tpu_custom_call.1} parent=1 // pred_region
      %s39 = ssub.s32 256, 256
      %40 = vsyncadd [#allocation4], %s39
      %s42 = sshll.u32 [#allocation5], 4
      %s43 = int_to_ptr.vmem [resolvable:$true] %s42
      %45 = dma.vmem_to_hbm [thread:$0]  %s43, 256, %s2, [#allocation4]
    $region17: #{tpu_custom_call.1} parent=1 // pred_fallthru
      _
    // Predicated region
    $region18: #{tpu_custom_call.1} parent=1 // pred_check
      _
    $region19: #{tpu_custom_call.1} parent=1 // pred_check_branch
      %47 = sbr.rel (0) target = $region21
    $region20: #{tpu_custom_call.1} parent=1 // pred_region
      %48 = dma.done [#allocation4], 256
    $region21: #{tpu_custom_call.1} parent=1 // pred_fallthru
      _
    %49 = vsyncpa [#allocation3], 1
    %50 = vsyncpa [#allocation4], 1

</llo_original>
